<compile_context>
chip_gen: v5e
topology: v5e:2x2
jax: 0.10.0
libtpu: 0.0.40
codegen_flags: <defaults>
</compile_context>

<pallas_src>
import functools
import math

import jax
import jax.numpy as jnp
from jax import lax
from jax.experimental import pallas as pl
from jax.experimental.pallas import tpu as pltpu


def _divfree_rbf_flat_kernel(x_ref, y_ref, o_ref, *, inv_ls, neg_half_inv_ls,
                             sigma_var, dim):
    # x_ref: (1, TN, d)   row r -> point r//d, coordinate on the lane axis
    # y_ref: (1, d, TM)   col c -> point c//d, coordinate on the sublane axis
    # o_ref: (1, TN, TM)  flattened gram: o[r, c] = K[r//d, c//d, r%d, c%d]
    x = x_ref[0].astype(jnp.float32)          # (TN, d)
    y = y_ref[0].astype(jnp.float32)          # (d, TM)

    tn = x.shape[0]
    tm = y.shape[1]

    # Per-coordinate pairwise differences on the flattened grid:
    #   diffs[k][r, c] = X[r//d, k] - Y[c//d, k]
    diffs = [x[:, k:k + 1] - y[k:k + 1, :] for k in range(dim)]

    # Squared distances (constant within each d x d block) — pure VPU.
    dists = diffs[0] * diffs[0]
    for k in range(1, dim):
        dists = dists + diffs[k] * diffs[k]

    kexp = sigma_var * jnp.exp(neg_half_inv_ls * dists)       # (TN, TM)
    scal_k = ((dim - 1.0) - dists * inv_ls) * kexp             # diagonal term
    ke_ls = kexp * inv_ls

    # r % d and c % d index grids.  Tile sizes are multiples of d (or the full
    # dim), so block starts land on point boundaries and local indices work.
    row_mod = lax.broadcasted_iota(jnp.int32, (tn, tm), 0) % dim
    col_mod = lax.broadcasted_iota(jnp.int32, (tn, tm), 1) % dim

    # diffA[r, c] = diffs[r % d][r, c] ; diffB[r, c] = diffs[c % d][r, c]
    diffA = diffs[0]
    diffB = diffs[0]
    for k in range(1, dim):
        diffA = jnp.where(row_mod == k, diffs[k], diffA)
        diffB = jnp.where(col_mod == k, diffs[k], diffB)

    out = diffA * (diffB * ke_ls)
    out = jnp.where(row_mod == col_mod, out + scal_k, out)
    o_ref[0] = out.astype(o_ref.dtype)


def _lcm(a, b):
    return a * b // math.gcd(a, b)


def _pick_flat_tile(flat, d, preferred, align):
    """Tile size along one flattened (points*d) output dim.

    Returns either the full extent (always a legal BlockSpec dim) or a tile
    that is a multiple of both d (blocks start on point boundaries) and the
    native sublane/lane alignment, capped near `preferred`."""
    step = _lcm(d, align)
    if flat <= max(preferred, step):
        return flat
    return max((preferred // step) * step, step)


def rbf_divergence_free_kernel(X, Y=None, *, length_scale, sigma_var=1.0,
                               flatten=True, tile_rows=256, tile_cols=1024,
                               out_dtype=None):
    """JAX/Pallas equivalent of RBFDivergenceFreeKernel.forward."""
    upranked = False
    if Y is None:
        Y = X
    if X.ndim == 2:
        X = X[None]
        upranked = True
    if Y.ndim == 2:
        Y = Y[None]
        upranked = True

    B, n, d = X.shape
    Bm, m, dm = Y.shape
    assert B == Bm and d == dm

    out_dtype = X.dtype if out_dtype is None else jnp.dtype(out_dtype)

    # Pre-expanded inputs (tiny: O(B*(n+m)*d^2) elements, done once in XLA).
    #   Xrows[b, r, k] = X[b, r//d, k]   (flattened rows on the sublane axis)
    #   Ycols[b, k, c] = Y[b, c//d, k]   (flattened cols on the lane axis)
    Xrows = jnp.repeat(X, d, axis=1)                              # (B, n*d, d)
    Ycols = jnp.repeat(jnp.transpose(Y, (0, 2, 1)), d, axis=2)    # (B, d, m*d)

    nr, mc = n * d, m * d
    tn = _pick_flat_tile(nr, d, tile_rows, 8)
    tm = _pick_flat_tile(mc, d, tile_cols, 128)
    # Large row-tile axis first so the v7x megacore split lands on a big,
    # even axis (B is often 1-2).  No effect on single-TC v5e/v6e.
    grid = (pl.cdiv(nr, tn), B, pl.cdiv(mc, tm))

    kernel = functools.partial(
        _divfree_rbf_flat_kernel,
        inv_ls=1.0 / float(length_scale),
        neg_half_inv_ls=-0.5 / float(length_scale),
        sigma_var=float(sigma_var),
        dim=d,
    )

    in_itemsize = jnp.dtype(X.dtype).itemsize
    cost = pl.CostEstimate(
        flops=int(B * nr * mc * (3 * d + 9)),
        transcendentals=int(B * nr * mc),
        bytes_accessed=int(B * nr * mc * out_dtype.itemsize
                           + (Xrows.size + Ycols.size) * in_itemsize),
    )

    K_flat = pl.pallas_call(
        kernel,
        out_shape=jax.ShapeDtypeStruct((B, nr, mc), out_dtype),
        grid_spec=pltpu.PrefetchScalarGridSpec(
            num_scalar_prefetch=0,
            grid=grid,
            in_specs=[
                pl.BlockSpec((1, tn, d), lambda i, b, j: (b, i, 0)),
                pl.BlockSpec((1, d, tm), lambda i, b, j: (b, 0, j)),
            ],
            out_specs=pl.BlockSpec((1, tn, tm), lambda i, b, j: (b, i, j)),
        ),
        compiler_params=pltpu.CompilerParams(
            dimension_semantics=("parallel", "parallel", "parallel"),
            vmem_limit_bytes=48 * 1024 * 1024),
        cost_estimate=cost,
    )(Xrows, Ycols)

    if flatten:
        # Kernel already emitted 'b (n d1) (m d2)' — no extra HBM pass.
        K = K_flat
    else:
        # Secondary path: module's unflattened convention (B, n, m, d, d).
        K = jnp.transpose(K_flat.reshape(B, n, d, m, d), (0, 1, 3, 2, 4))
    if upranked:
        K = K[0]
    return K


def _reference(X, Y=None, *, length_scale, sigma_var=1.0, flatten=True):
    """Pure-JAX reference mirroring the PyTorch forward exactly."""
    upranked = False
    if Y is None:
        Y = X
    if X.ndim == 2:
        X = X[None]
        upranked = True
    if Y.ndim == 2:
        Y = Y[None]
        upranked = True
    d = X.shape[-1]
    diff = X[..., :, None, :] - Y[..., None, :, :]          # (b, n, m, d)
    dists = jnp.sum(diff ** 2, axis=-1)                     # (b, n, m)
    Ks = sigma_var * jnp.exp(-0.5 * dists / length_scale)[..., None, None]
    outer = diff[..., :, None] * diff[..., None, :]          # (b, n, m, d, d)
    I = jnp.eye(d, dtype=X.dtype)
    A = outer / length_scale + (d - 1 - dists / length_scale)[..., None, None] * I
    K = A * Ks
    if flatten:
        b, n, m = K.shape[0], K.shape[1], K.shape[2]
        K = jnp.transpose(K, (0, 1, 3, 2, 4)).reshape(b, n * d, m * d)
    if upranked:
        K = K[0]
    return K


if __name__ == "__main__":
    key = jax.random.PRNGKey(0)
    kx, ky, kx2, ky2 = jax.random.split(key, 4)

    length_scale = 0.5
    sigma_var = 1.3

    # 1) Small batched case (d == input_dim == rkhs_dim), flattened gram.
    B, n, m, d = 2, 8, 8, 2
    X = jax.random.normal(kx, (B, n, d), dtype=jnp.float32)
    Y = jax.random.normal(ky, (B, m, d), dtype=jnp.float32)
    K = rbf_divergence_free_kernel(X, Y, length_scale=length_scale,
                                   sigma_var=sigma_var, flatten=True)
    K = jax.block_until_ready(K)
    K_ref = _reference(X, Y, length_scale=length_scale,
                       sigma_var=sigma_var, flatten=True)
    assert K.shape == (B, n * d, m * d)
    assert jnp.allclose(K, K_ref, atol=1e-5, rtol=1e-5)

    # 2) Un-batched X, Y=None path: (n*d, n*d)
    K2 = rbf_divergence_free_kernel(X[0], None, length_scale=length_scale,
                                    sigma_var=sigma_var, flatten=True)
    K2 = jax.block_until_ready(K2)
    K2_ref = _reference(X[0], None, length_scale=length_scale,
                        sigma_var=sigma_var, flatten=True)
    assert K2.shape == (n * d, n * d)
    assert jnp.allclose(K2, K2_ref, atol=1e-5, rtol=1e-5)

    # 3) Larger d=3 case exercising the tiled 3-D grid (grid = (4, 2, 2)),
    #    un-flattened output convention (B, n, m, d, d).
    B3, n3, m3, d3 = 2, 64, 256, 3
    X3 = jax.random.normal(kx2, (B3, n3, d3), dtype=jnp.float32)
    Y3 = jax.random.normal(ky2, (B3, m3, d3), dtype=jnp.float32)
    K3 = rbf_divergence_free_kernel(X3, Y3, length_scale=length_scale,
                                    sigma_var=sigma_var, flatten=False,
                                    tile_rows=48, tile_cols=384)
    K3 = jax.block_until_ready(K3)
    K3_ref = _reference(X3, Y3, length_scale=length_scale,
                        sigma_var=sigma_var, flatten=False)
    assert K3.shape == (B3, n3, m3, d3, d3)
    assert jnp.allclose(K3, K3_ref, atol=1e-5, rtol=1e-5)

    # 4) bf16 output path (halved HBM writeback), flattened, default tiles.
    Kb = rbf_divergence_free_kernel(X3, Y3, length_scale=length_scale,
                                    sigma_var=sigma_var, flatten=True,
                                    out_dtype=jnp.bfloat16)
    Kb = jax.block_until_ready(Kb)
    Kb_ref = _reference(X3, Y3, length_scale=length_scale,
                        sigma_var=sigma_var, flatten=True)
    assert Kb.shape == (B3, n3 * d3, m3 * d3)
    assert Kb.dtype == jnp.bfloat16
    assert jnp.allclose(Kb.astype(jnp.float32), Kb_ref, atol=5e-2, rtol=5e-2)

    print("KERNEL_OK")
</pallas_src>

<mosaic_0001>
module attributes {stable_mosaic.version = 11 : i64} {
  func.func @_divfree_rbf_flat_kernel(%arg0: i32, %arg1: i32, %arg2: i32, %arg3: memref<1x16x2xf32, #tpu.memory_space<vmem>>, %arg4: memref<1x2x16xf32, #tpu.memory_space<vmem>>, %arg5: memref<1x16x16xf32, #tpu.memory_space<vmem>>) attributes {dimension_semantics = [#tpu.dimension_semantics<parallel>, #tpu.dimension_semantics<parallel>, #tpu.dimension_semantics<parallel>], iteration_bounds = array<i64: 1, 2, 1>, scalar_prefetch = 0 : i64, scratch_operands = 0 : i64, tpu.core_type = #tpu.core_type<tc>, window_params = [{transform_indices = @transform_0, window_bounds = array<i64: 1, 16, 2>}, {transform_indices = @transform_1, window_bounds = array<i64: 1, 2, 16>}, {transform_indices = @transform_2, window_bounds = array<i64: 1, 16, 16>}]} {
    %c0 = arith.constant 0 : index
    %c0_0 = arith.constant 0 : index
    %c0_1 = arith.constant 0 : index
    %0 = vector.load %arg3[%c0, %c0_0, %c0_1] : memref<1x16x2xf32, #tpu.memory_space<vmem>>, vector<1x16x2xf32>
    %1 = vector.shape_cast %0 : vector<1x16x2xf32> to vector<16x2xf32>
    %c0_2 = arith.constant 0 : index
    %c0_3 = arith.constant 0 : index
    %c0_4 = arith.constant 0 : index
    %2 = vector.load %arg4[%c0_2, %c0_3, %c0_4] : memref<1x2x16xf32, #tpu.memory_space<vmem>>, vector<1x2x16xf32>
    %3 = vector.shape_cast %2 : vector<1x2x16xf32> to vector<2x16xf32>
    %4 = vector.extract_strided_slice %1 {offsets = [0, 0], sizes = [16, 1], strides = [1, 1]} : vector<16x2xf32> to vector<16x1xf32>
    %5 = vector.extract_strided_slice %3 {offsets = [0, 0], sizes = [1, 16], strides = [1, 1]} : vector<2x16xf32> to vector<1x16xf32>
    %6 = vector.broadcast %4 : vector<16x1xf32> to vector<16x16xf32>
    %7 = vector.broadcast %5 : vector<1x16xf32> to vector<16x16xf32>
    %8 = arith.subf %6, %7 : vector<16x16xf32>
    %9 = vector.extract_strided_slice %1 {offsets = [0, 1], sizes = [16, 1], strides = [1, 1]} : vector<16x2xf32> to vector<16x1xf32>
    %10 = vector.extract_strided_slice %3 {offsets = [1, 0], sizes = [1, 16], strides = [1, 1]} : vector<2x16xf32> to vector<1x16xf32>
    %11 = vector.broadcast %9 : vector<16x1xf32> to vector<16x16xf32>
    %12 = vector.broadcast %10 : vector<1x16xf32> to vector<16x16xf32>
    %13 = arith.subf %11, %12 : vector<16x16xf32>
    %14 = arith.mulf %8, %8 : vector<16x16xf32>
    %15 = arith.mulf %13, %13 : vector<16x16xf32>
    %16 = arith.addf %14, %15 : vector<16x16xf32>
    %cst = arith.constant -1.000000e+00 : f32
    %17 = vector.broadcast %cst : f32 to vector<16x16xf32>
    %18 = arith.mulf %17, %16 : vector<16x16xf32>
    %19 = math.exp %18 : vector<16x16xf32>
    %cst_5 = arith.constant 1.300000e+00 : f32
    %20 = vector.broadcast %cst_5 : f32 to vector<16x16xf32>
    %21 = arith.mulf %20, %19 : vector<16x16xf32>
    %cst_6 = arith.constant 2.000000e+00 : f32
    %22 = vector.broadcast %cst_6 : f32 to vector<16x16xf32>
    %23 = arith.mulf %16, %22 : vector<16x16xf32>
    %cst_7 = arith.constant 1.000000e+00 : f32
    %24 = vector.broadcast %cst_7 : f32 to vector<16x16xf32>
    %25 = arith.subf %24, %23 : vector<16x16xf32>
    %26 = arith.mulf %25, %21 : vector<16x16xf32>
    %cst_8 = arith.constant 2.000000e+00 : f32
    %27 = vector.broadcast %cst_8 : f32 to vector<16x16xf32>
    %28 = arith.mulf %21, %27 : vector<16x16xf32>
    %29 = tpu.iota {dimensions = array<i32: 0>} : vector<16x16xi32>
    %c2_i32 = arith.constant 2 : i32
    %c0_i32 = arith.constant 0 : i32
    %30 = arith.cmpi eq, %c2_i32, %c0_i32 : i32
    %c1_i32 = arith.constant 1 : i32
    %31 = arith.select %30, %c1_i32, %c2_i32 : i32
    %32 = vector.broadcast %31 : i32 to vector<16x16xi32>
    %33 = arith.remsi %29, %32 : vector<16x16xi32>
    %c0_i32_9 = arith.constant 0 : i32
    %34 = vector.broadcast %c0_i32_9 : i32 to vector<16x16xi32>
    %35 = arith.cmpi ne, %33, %34 : vector<16x16xi32>
    %c0_i32_10 = arith.constant 0 : i32
    %36 = vector.broadcast %c0_i32_10 : i32 to vector<16x16xi32>
    %37 = arith.cmpi slt, %33, %36 : vector<16x16xi32>
    %c0_i32_11 = arith.constant 0 : i32
    %38 = arith.cmpi slt, %31, %c0_i32_11 : i32
    %39 = vector.broadcast %38 : i1 to vector<16x16xi1>
    %40 = vector.broadcast %39 : vector<16x16xi1> to vector<16x16xi1>
    %41 = arith.xori %37, %40 : vector<16x16xi1>
    %42 = arith.andi %41, %35 : vector<16x16xi1>
    %43 = vector.broadcast %31 : i32 to vector<16x16xi32>
    %44 = arith.addi %33, %43 : vector<16x16xi32>
    %45 = arith.select %42, %44, %33 : vector<16x16xi1>, vector<16x16xi32>
    %46 = tpu.iota {dimensions = array<i32: 1>} : vector<16x16xi32>
    %c2_i32_12 = arith.constant 2 : i32
    %c0_i32_13 = arith.constant 0 : i32
    %47 = arith.cmpi eq, %c2_i32_12, %c0_i32_13 : i32
    %c1_i32_14 = arith.constant 1 : i32
    %48 = arith.select %47, %c1_i32_14, %c2_i32_12 : i32
    %49 = vector.broadcast %48 : i32 to vector<16x16xi32>
    %50 = arith.remsi %46, %49 : vector<16x16xi32>
    %c0_i32_15 = arith.constant 0 : i32
    %51 = vector.broadcast %c0_i32_15 : i32 to vector<16x16xi32>
    %52 = arith.cmpi ne, %50, %51 : vector<16x16xi32>
    %c0_i32_16 = arith.constant 0 : i32
    %53 = vector.broadcast %c0_i32_16 : i32 to vector<16x16xi32>
    %54 = arith.cmpi slt, %50, %53 : vector<16x16xi32>
    %c0_i32_17 = arith.constant 0 : i32
    %55 = arith.cmpi slt, %48, %c0_i32_17 : i32
    %56 = vector.broadcast %55 : i1 to vector<16x16xi1>
    %57 = vector.broadcast %56 : vector<16x16xi1> to vector<16x16xi1>
    %58 = arith.xori %54, %57 : vector<16x16xi1>
    %59 = arith.andi %58, %52 : vector<16x16xi1>
    %60 = vector.broadcast %48 : i32 to vector<16x16xi32>
    %61 = arith.addi %50, %60 : vector<16x16xi32>
    %62 = arith.select %59, %61, %50 : vector<16x16xi1>, vector<16x16xi32>
    %c1_i32_18 = arith.constant 1 : i32
    %63 = vector.broadcast %c1_i32_18 : i32 to vector<16x16xi32>
    %64 = arith.cmpi eq, %45, %63 : vector<16x16xi32>
    %65 = arith.select %64, %13, %8 : vector<16x16xi1>, vector<16x16xf32>
    %c1_i32_19 = arith.constant 1 : i32
    %66 = vector.broadcast %c1_i32_19 : i32 to vector<16x16xi32>
    %67 = arith.cmpi eq, %62, %66 : vector<16x16xi32>
    %68 = arith.select %67, %13, %8 : vector<16x16xi1>, vector<16x16xf32>
    %69 = arith.mulf %68, %28 : vector<16x16xf32>
    %70 = arith.mulf %65, %69 : vector<16x16xf32>
    %71 = arith.cmpi eq, %45, %62 : vector<16x16xi32>
    %72 = arith.addf %70, %26 : vector<16x16xf32>
    %73 = arith.select %71, %72, %70 : vector<16x16xi1>, vector<16x16xf32>
    %c0_20 = arith.constant 0 : index
    %c0_21 = arith.constant 0 : index
    %c0_22 = arith.constant 0 : index
    %74 = vector.load %arg5[%c0_20, %c0_21, %c0_22] : memref<1x16x16xf32, #tpu.memory_space<vmem>>, vector<1x16x16xf32>
    %75 = vector.shape_cast %74 : vector<1x16x16xf32> to vector<16x16xf32>
    %76 = vector.shape_cast %73 : vector<16x16xf32> to vector<1x16x16xf32>
    tpu.vector_store %arg5[%c0_20, %c0_21, %c0_22], %76 {strides = array<i32>} : memref<1x16x16xf32, #tpu.memory_space<vmem>>, vector<1x16x16xf32>,
    return
  }
  func.func @transform_0(%arg0: i32, %arg1: i32, %arg2: i32) -> (i32, i32, i32) {
    %c0_i32 = arith.constant 0 : i32
    %c0_i32_0 = arith.constant 0 : i32
    return %arg1, %arg0, %c0_i32 : i32, i32, i32
  }
  func.func @transform_1(%arg0: i32, %arg1: i32, %arg2: i32) -> (i32, i32, i32) {
    %c0_i32 = arith.constant 0 : i32
    %c0_i32_0 = arith.constant 0 : i32
    return %arg1, %c0_i32, %arg2 : i32, i32, i32
  }
  func.func @transform_2(%arg0: i32, %arg1: i32, %arg2: i32) -> (i32, i32, i32) {
    %c0_i32 = arith.constant 0 : i32
    return %arg1, %arg0, %arg2 : i32, i32, i32
  }
}

</mosaic_0001>

<llo_original>
// kernel: tpu_custom_call.1
$region0: #{tpu_custom_call.1}
  #allocation0 [shape = 'u32[]', space=smem, size = 0x4, offset = 0x4, fixed_abs, tag = 'smem constant byte address 0x4 - core index']
  #allocation1 [shape = 'u32[72,128]{1,0:T(1,128)}', space=vmem, size = 0x9000, scoped, tag = 'internal scratch']
  %s0 = inlined_call_operand.vmem [shape: f32[2,16,2], index: 0, kind: input, shape index: {}]
  %s1 = inlined_call_operand.vmem [shape: f32[2,2,16], index: 1, kind: input, shape index: {}]
  %s2 = inlined_call_operand.hbm [shape: f32[2,16,16], index: 2, kind: output, shape index: {}]
  %s3 = sld [smem:[#allocation0]]
  $region41: #{tpu_custom_call.1} parent=0
    _
  %s5 = ssub.s32 1, %s3
  %s6 = scalar_select 0, %s5, %s3
  $region1: #{tpu_custom_call.1} parent=0
    #allocation2 [shape = 'u8[16384]{0}', space=vmem, size = 0x4000, scoped, tag = 'output window, operand 0']
    #allocation3 [shape = 's32[2]{0}', space=sflag, size = 0x8, scoped, tag = 'scoped memory for tpu_custom_call.1']
    %7 = vsyncpa [#allocation3], 0
    %s8 = scalar_lea.sflag [#allocation3], 1
    %9 = vsyncpa %s8, 0
    loop: start=0, step=1, limit=4
    $region2: #{tpu_custom_call.1} parent=1 // loop_pre_header
      _
    $region3: #{tpu_custom_call.1} parent=1 // loop_header
      %s11 = sphi 0, %s15
      %p12 = scmp.ge.s32.totalorder %s11, 4
      %s18 = sphi 0, %s37
      %s19 = sphi 0, %s33
      %s20 = sphi 0, %s29
      %s21 = sphi 0, %s18
      %s22 = sphi 0, %s19
      %s23 = sphi 0, %s20
      %s24 = sphi 0, %s21
      %s25 = sphi 0, %s22
      %s26 = sphi 0, %s23
      %s42 = sphi 0, %s44
      %s45 = sphi 0, %s42
      %s46 = sphi 0, %s45
      %s62 = sphi 0, %s46
      %s70 = sphi 0, %s72
      %s73 = sphi 0, %s70
      %s74 = sphi 0, %s73
      %s90 = sphi 0, %s74
      %s100 = sphi 0, %s102
      %s103 = sphi 0, %s100
      %s104 = sphi 0, %s103
      %s120 = sphi 0, %s104
    $region4: #{tpu_custom_call.1} parent=1 // loop_header_branch
      %14 = sbr.rel (%p12) target = $region8
    $region5: #{tpu_custom_call.1} parent=1 // loop_body
      %s16 = ssub.s32 %s11, 1
      %s17 = ssub.s32 %s11, 2
      %s27 = sadd.s32 1, %s20
      %p28 = scmp.ge.s32.totalorder %s27, 1
      %s29 = scalar_select %p28, 0, %s27
      %s30 = sadd.s32 1, %s19
      %s31 = scalar_select %p28, %s30, %s19
      %p32 = scmp.ge.s32.totalorder %s31, 2
      %s33 = scalar_select %p32, 0, %s31
      %s34 = sadd.s32 1, %s18
      %s35 = scalar_select %p32, %s34, %s18
      %p36 = scmp.ge.s32.totalorder %s35, 1
      %s37 = scalar_select %p36, 0, %s35
      %s38 = ssub.s32 %s19, %s33
      %s39 = ssub.s32 %s18, %s37
      %s40 = sor.u32 %s38, %s39
      %p41 = scmp.eq.s32.totalorder %s40, 0
      %s43 = sadd.s32 %s42, 1
      %s44 = scalar_select %p41, %s42, %s43
      %p47 = pneg %p41
      %p48 = scmp.eq.s32.totalorder %s11, 1
      %p49 = por %p47, %p48
      %p50 = scmp.ne.s32.totalorder %s42, %s45
      %p51 = scmp.eq.s32.totalorder %s11, 0
      %p52 = por %p50, %p51
      %p53 = scmp.ne.s32.totalorder %s42, %s45
      %p54 = scmp.eq.s32.totalorder %s16, 1
      %p55 = por %p53, %p54
      %p56 = scmp.ne.s32.totalorder %s45, %s46
      %p57 = scmp.eq.s32.totalorder %s16, 0
      %p58 = por %p56, %p57
      %p59 = scmp.ne.s32.totalorder %s45, %s46
      %p60 = scmp.eq.s32.totalorder %s17, 1
      %p61 = por %p59, %p60
      %p63 = scmp.ne.s32.totalorder %s46, %s62
      %p64 = scmp.eq.s32.totalorder %s17, 0
      %p65 = por %p63, %p64
      %s66 = ssub.s32 %s19, %s33
      %s67 = ssub.s32 %s20, %s29
      %s68 = sor.u32 %s66, %s67
      %p69 = scmp.eq.s32.totalorder %s68, 0
      %s71 = sadd.s32 %s70, 1
      %s72 = scalar_select %p69, %s70, %s71
      %p75 = pneg %p69
      %p76 = scmp.eq.s32.totalorder %s11, 1
      %p77 = por %p75, %p76
      %p78 = scmp.ne.s32.totalorder %s70, %s73
      %p79 = scmp.eq.s32.totalorder %s11, 0
      %p80 = por %p78, %p79
      %p81 = scmp.ne.s32.totalorder %s70, %s73
      %p82 = scmp.eq.s32.totalorder %s16, 1
      %p83 = por %p81, %p82
      %p84 = scmp.ne.s32.totalorder %s73, %s74
      %p85 = scmp.eq.s32.totalorder %s16, 0
      %p86 = por %p84, %p85
      %p87 = scmp.ne.s32.totalorder %s73, %s74
      %p88 = scmp.eq.s32.totalorder %s17, 1
      %p89 = por %p87, %p88
      %p91 = scmp.ne.s32.totalorder %s74, %s90
      %p92 = scmp.eq.s32.totalorder %s17, 0
      %p93 = por %p91, %p92
      %s94 = ssub.s32 %s19, %s33
      %s95 = ssub.s32 %s18, %s37
      %s96 = sor.u32 %s94, %s95
      %s97 = ssub.s32 %s20, %s29
      %s98 = sor.u32 %s96, %s97
      %p99 = scmp.eq.s32.totalorder %s98, 0
      %s101 = sadd.s32 %s100, 1
      %s102 = scalar_select %p99, %s100, %s101
      %p105 = pneg %p99
      %p106 = scmp.eq.s32.totalorder %s11, 1
      %p107 = por %p105, %p106
      %p108 = scmp.ne.s32.totalorder %s100, %s103
      %p109 = scmp.eq.s32.totalorder %s11, 0
      %p110 = por %p108, %p109
      %p111 = scmp.ne.s32.totalorder %s100, %s103
      %p112 = scmp.eq.s32.totalorder %s16, 1
      %p113 = por %p111, %p112
      %p114 = scmp.ne.s32.totalorder %s103, %s104
      %p115 = scmp.eq.s32.totalorder %s16, 0
      %p116 = por %p114, %p115
      %p117 = scmp.ne.s32.totalorder %s103, %s104
      %p118 = scmp.eq.s32.totalorder %s17, 1
      %p119 = por %p117, %p118
      %p121 = scmp.ne.s32.totalorder %s104, %s120
      %p122 = scmp.eq.s32.totalorder %s17, 0
      %p123 = por %p121, %p122
      %p124 = scmp.le.s32.totalorder 1, %s11
      %p125 = scmp.lt.s32.totalorder %s11, 3
      %p126 = pnand %p124, %p125
      %p127 = pneg %p126
      // Predicated region
      $region9: #{tpu_custom_call.1} parent=5 // pred_check
        _
      $region10: #{tpu_custom_call.1} parent=5 // pred_check_branch
        %129 = sbr.rel (%p126) target = $region12
      $region11: #{tpu_custom_call.1} parent=5 // pred_region
        %s130 = ssub.s32 %s11, 1
      $region12: #{tpu_custom_call.1} parent=5 // pred_fallthru
        _
      %p131 = scmp.lt.s32.totalorder %s11, 2
      // Predicated region
      $region13: #{tpu_custom_call.1} parent=5 // pred_check
        %p132 = pneg %p131
      $region14: #{tpu_custom_call.1} parent=5 // pred_check_branch
        %134 = sbr.rel (%p132) target = $region16
      $region15: #{tpu_custom_call.1} parent=5 // pred_region
        // Predicated region
        $region17: #{tpu_custom_call.1} parent=15 // pred_check
          %p135 = pneg %p52
        $region18: #{tpu_custom_call.1} parent=15 // pred_check_branch
          %137 = sbr.rel (%p135) target = $region20
        $region19: #{tpu_custom_call.1} parent=15 // pred_region
          %s138 = smul.u32 2, %s18
          %p139 = scmp.lt.s32.totalorder %s19, 1
          %s140 = scalar_select %p139, %s19, 1
          %p141 = scmp.lt.s32.totalorder %s138, 1
          %s142 = scalar_select %p141, %s138, 1
          %s143 = smul.addr %s140, 2
          %s144 = sadd.s32 %s142, %s143
          %s145 = smul.addr %s144, 8
          %s146 = scalar_lea.vmem %s0, %s145
          %s147 = smul.u32 2, %s18
        $region20: #{tpu_custom_call.1} parent=15 // pred_fallthru
          _
        // Predicated region
        $region21: #{tpu_custom_call.1} parent=15 // pred_check
          %p148 = pneg %p80
        $region22: #{tpu_custom_call.1} parent=15 // pred_check_branch
          %150 = sbr.rel (%p148) target = $region24
        $region23: #{tpu_custom_call.1} parent=15 // pred_region
          %p151 = scmp.lt.s32.totalorder %s19, 1
          %s152 = scalar_select %p151, %s19, 1
          %p153 = scmp.lt.s32.totalorder %s20, 0
          %s154 = scalar_select %p153, %s20, 0
          %s155 = sadd.s32 %s154, %s152
          %s156 = smul.addr %s155, 2
          %s157 = scalar_lea.vmem %s1, %s156
        $region24: #{tpu_custom_call.1} parent=15 // pred_fallthru
          _
      $region16: #{tpu_custom_call.1} parent=5 // pred_fallthru
        _
      %p158 = scmp.le.s32.totalorder 1, %s11
      %p159 = scmp.lt.s32.totalorder %s11, 3
      %p160 = pnand %p158, %p159
      %p161 = pneg %p160
      // Predicated region
      $region25: #{tpu_custom_call.1} parent=5 // pred_check
        _
      $region26: #{tpu_custom_call.1} parent=5 // pred_check_branch
        %163 = sbr.rel (%p160) target = $region28
      $region27: #{tpu_custom_call.1} parent=5 // pred_region
        %s164 = ssub.s32 %s11, 1
        %s165 = smul.u32 2, %s21
        %p166 = scmp.lt.s32.totalorder %s22, 1
        %s167 = scalar_select %p166, %s22, 1
        %p168 = scmp.lt.s32.totalorder %s165, 1
        %s169 = scalar_select %p168, %s165, 1
        %s170 = smul.addr %s167, 2
        %s171 = sadd.s32 %s169, %s170
        %s172 = smul.addr %s171, 8
        %s173 = scalar_lea.vmem %s0, %s172
        %p174 = pneg %p58
        %p175 = pneg %p55
        %p176 = scmp.lt.s32.totalorder %s22, 1
        %s177 = scalar_select %p176, %s22, 1
        %p178 = scmp.lt.s32.totalorder %s23, 0
        %s179 = scalar_select %p178, %s23, 0
        %s180 = sadd.s32 %s179, %s177
        %s181 = smul.addr %s180, 2
        %s182 = scalar_lea.vmem %s1, %s181
        %p183 = pneg %p86
        %p184 = pneg %p83
        %p185 = pneg %p116
        %p186 = pneg %p113
        %s187 = sand.u32 %s103, 1
        %s188 = scalar_lea.sflag [#allocation3], %s187
        %s189 = sand.u32 %s103, 1
        %s190 = smul.addr %s189, 16
        %s191 = scalar_lea.vmem [#allocation2], %s190
        %s192 = smul.u32 2, %s21
        %p193 = scmp.lt.s32.totalorder %s22, 1
        %s194 = scalar_select %p193, %s22, 1
        %p195 = scmp.lt.s32.totalorder %s192, 1
        %s196 = scalar_select %p195, %s192, 1
        %s197 = smul.addr %s194, 2
        %s198 = sadd.s32 %s196, %s197
        %s199 = smul.addr %s198, 8
        %s200 = scalar_lea.vmem %s0, %s199
        %s201 = smul.u32 2, %s21
        %p202 = scmp.lt.s32.totalorder %s22, 1
        %s203 = scalar_select %p202, %s22, 1
        %p204 = scmp.lt.s32.totalorder %s23, 0
        %s205 = scalar_select %p204, %s23, 0
        %s206 = sadd.s32 %s205, %s203
        %s207 = smul.addr %s206, 2
        %s208 = scalar_lea.vmem %s1, %s207
        %s209 = smul.u32 2, %s21
        %v210 = vld [vmem:[%s200] sm:$0xff]
        %v211 = vld [vmem:[%s200 + $0x8] sm:$0xff]
        %v212 = vld [vmem:[%s208] sm:$0x3]
        %214 = vset.pattern.permute.xlu0 0
        %215 = vperm.xlu0 %214, %v210
        %v216 = vpop.permute.xlu0 %215
        %219 = vset.pattern.permute.xlu0 0
        %220 = vperm.xlu0 %219, %v211
        %v221 = vpop.permute.xlu0 %220
        %v223 = vperm.slane %v212, 0
        %v224 = vsub.f32 %v216, %v223
        %v225 = vsub.f32 %v221, %v223
        %226 = vset.pattern.permute.xlu0 1
        %227 = vperm.xlu0 %226, %v210
        %v228 = vpop.permute.xlu0 %227
        %230 = vset.pattern.permute.xlu0 1
        %231 = vperm.xlu0 %230, %v211
        %v232 = vpop.permute.xlu0 %231
        %v234 = vperm.slane %v212, 1
        %v235 = vsub.f32 %v228, %v234
        %v236 = vsub.f32 %v232, %v234
        %v237 = vmul.f32 %v224, %v224
        %v238 = vmul.f32 %v225, %v225
        %v239 = vmul.f32 %v235, %v235
        %v240 = vmul.f32 %v236, %v236
        %v241 = vadd.f32 %v237, %v239
        %v242 = vadd.f32 %v238, %v240
        %v243 = vmul.f32 %v241, -1.0
        %v244 = vmul.f32 %v242, -1.0
        %v245 = vmul.f32 %v243, 1.442695
        %v246 = vpow.pop %v245
        %v247 = vmul.f32 %v244, 1.442695
        %v248 = vpow.pop %v247
        %v249 = vmul.f32 %v246, 1.3
        %v250 = vmul.f32 %v248, 1.3
        %v251 = vmul.f32 %v241, 2.0
        %v252 = vmul.f32 %v242, 2.0
        %v253 = vsub.f32 1.0, %v251
        %v254 = vsub.f32 1.0, %v252
        %v255 = vmul.f32 %v253, %v249
        %v256 = vmul.f32 %v254, %v250
        %v257 = vmul.f32 %v249, 2.0
        %v258 = vmul.f32 %v250, 2.0
        %v259 = vlaneseq
        %v260 = vshrl.u32 %v259, 7
        %v261 = vadd.s32 %v260, 8
        %vm262 = vcmp.lt.s32.totalorder %v260, 0
        %v263 = vsub.s32 0, %v260
        %v264 = vsel %vm262, %v263, %v260
        %v265 = vshrl.u32 %v264, 1
        %v266 = vand.u32 %v264, 1
        %v267 = vsub.s32 0, %v266
        %v268 = vsel %vm262, %v267, %v266
        %vm269 = vcmp.lt.s32.totalorder %v261, 0
        %v270 = vsub.s32 0, %v261
        %v271 = vsel %vm269, %v270, %v261
        %v272 = vshrl.u32 %v271, 1
        %v273 = vand.u32 %v271, 1
        %v274 = vsub.s32 0, %v273
        %v275 = vsel %vm269, %v274, %v273
        %vm276 = vcmp.ne.s32.totalorder %v268, 0
        %vm277 = vcmp.ne.s32.totalorder %v275, 0
        %vm278 = vcmp.lt.s32.totalorder %v268, 0
        %vm279 = vcmp.lt.s32.totalorder %v275, 0
        %vm280 = vmand %vm278, %vm276
        %vm281 = vmand %vm279, %vm277
        %v282 = vadd.s32 %v268, 2
        %v283 = vadd.s32 %v275, 2
        %v284 = vsel %vm280, %v282, %v268
        %v285 = vsel %vm281, %v283, %v275
        %v286 = vlaneseq
        %v287 = vand.u32 %v286, 127
        %vm288 = vcmp.lt.s32.totalorder %v287, 0
        %v289 = vsub.s32 0, %v287
        %v290 = vsel %vm288, %v289, %v287
        %v291 = vshrl.u32 %v290, 1
        %v292 = vand.u32 %v290, 1
        %v293 = vsub.s32 0, %v292
        %v294 = vsel %vm288, %v293, %v292
        %vm295 = vcmp.ne.s32.totalorder %v294, 0
        %vm296 = vcmp.lt.s32.totalorder %v294, 0
        %vm297 = vmand %vm296, %vm295
        %v298 = vadd.s32 %v294, 2
        %v299 = vsel %vm297, %v298, %v294
        %vm300 = vcmp.eq.s32.totalorder %v284, 1
        %vm301 = vcmp.eq.s32.totalorder %v285, 1
        %v302 = vsel %vm300, %v235, %v224
        %v303 = vsel %vm301, %v236, %v225
        %vm304 = vcmp.eq.s32.totalorder %v299, 1
        %v305 = vsel %vm304, %v235, %v224
        %v306 = vsel %vm304, %v236, %v225
        %v307 = vmul.f32 %v305, %v257
        %v308 = vmul.f32 %v306, %v258
        %v309 = vmul.f32 %v302, %v307
        %v310 = vmul.f32 %v303, %v308
        %vm311 = vcmp.eq.s32.totalorder %v284, %v299
        %vm312 = vcmp.eq.s32.totalorder %v285, %v299
        %v313 = vadd.f32 %v309, %v255
        %v314 = vadd.f32 %v310, %v256
        %v315 = vsel %vm311, %v313, %v309
        %v316 = vsel %vm312, %v314, %v310
        %vm317 = vcmask 130048
        %318 = vst.msk [vmem:[%s191] sm:$0xff] %vm317, %v315
        %319 = vst.msk [vmem:[%s191 + $0x8] sm:$0xff] %vm317, %v316
        %s320 = sand.u32 %s103, 1
        %s321 = scalar_lea.sflag [#allocation3], %s320
        %s322 = sand.u32 %s103, 1
        %s323 = smul.addr %s322, 16
        %s324 = scalar_lea.vmem [#allocation2], %s323
        // Predicated region
        $region29: #{tpu_custom_call.1} parent=27 // pred_check
          %p325 = pneg %p113
        $region30: #{tpu_custom_call.1} parent=27 // pred_check_branch
          %327 = sbr.rel (%p325) target = $region32
        $region31: #{tpu_custom_call.1} parent=27 // pred_region
          %s328 = smul.u32 2, %s21
          %330 = vsyncadd %s321, 0
          %s331 = sadd.s32 %s23, %s328
          %s332 = smul.addr %s22, 2
          %s333 = sadd.s32 %s331, %s332
          %s334 = smul.addr %s333, 8
          %s335 = scalar_lea.hbm %s2, %s334
          %s336 = sshll.u32 %s324, 4
          %s337 = int_to_ptr.vmem [resolvable:$true] %s336
          %s338 = sshll.u32 %s335, 4
          %s339 = int_to_ptr.hbm [resolvable:$true] %s338
          %344 = dma.vmem_to_hbm [thread:$0]  %s337, 256, %s339, %s321, 128, 128, 8
        $region32: #{tpu_custom_call.1} parent=27 // pred_fallthru
          _
      $region28: #{tpu_custom_call.1} parent=5 // pred_fallthru
        _
      %p345 = scmp.le.s32.totalorder 2, %s11
      // Predicated region
      $region33: #{tpu_custom_call.1} parent=5 // pred_check
        %p346 = pneg %p345
      $region34: #{tpu_custom_call.1} parent=5 // pred_check_branch
        %348 = sbr.rel (%p346) target = $region36
      $region35: #{tpu_custom_call.1} parent=5 // pred_region
        %s349 = ssub.s32 %s11, 2
        // Predicated region
        $region37: #{tpu_custom_call.1} parent=35 // pred_check
          %p350 = pneg %p119
        $region38: #{tpu_custom_call.1} parent=35 // pred_check_branch
          %352 = sbr.rel (%p350) target = $region40
        $region39: #{tpu_custom_call.1} parent=35 // pred_region
          %s353 = sand.u32 %s104, 1
          %s354 = scalar_lea.sflag [#allocation3], %s353
          %s355 = sand.u32 %s104, 1
          %s356 = smul.addr %s355, 16
          %s357 = scalar_lea.vmem [#allocation2], %s356
          %359 = dma.done %s354, 256
        $region40: #{tpu_custom_call.1} parent=35 // pred_fallthru
          _
      $region36: #{tpu_custom_call.1} parent=5 // pred_fallthru
        _
    $region6: #{tpu_custom_call.1} parent=1 // loop_footer
      %s15 = sadd.s32 1, %s11
    $region7: #{tpu_custom_call.1} parent=1 // loop_footer_branch
      %10 = sbr.rel target = $region3
    $region8: #{tpu_custom_call.1} parent=1 // loop_exit
      _
    %360 = vsyncpa [#allocation3], 1
    %s361 = scalar_lea.sflag [#allocation3], 1
    %362 = vsyncpa %s361, 1

</llo_original>
